<compile_context>
chip_gen: v5e
topology: v5e:2x2
jax: 0.10.0
libtpu: 0.0.40
codegen_flags: <defaults>
</compile_context>

<pallas_src>
import functools

import jax
import jax.numpy as jnp
from jax.experimental import pallas as pl
from jax.experimental.pallas import tpu as pltpu


def _round_up(x, m):
    return (x + m - 1) // m * m


def _vmem_budget_bytes():
    """Generation-gated VMEM budget (leaves headroom for compiler scratch)."""
    try:
        cap = int(pltpu.get_tpu_info().vmem_capacity_bytes)
    except Exception:
        cap = 128 * 2**20          # assume a 128-MiB part if query unavailable
    # ~48 MiB on a 64-MiB part (v7x), 96-100 MiB on 128-MiB parts (v5e/v6e).
    return int(min(cap * 3 // 4, 100 * 2**20))


# ---------------------------------------------------------------------------
# Input linear + ReLU (row-tiled, row axis "parallel")
# ---------------------------------------------------------------------------
def _in_linear_kernel(x_ref, w_ref, b_ref, o_ref):
    y = jnp.dot(x_ref[...], w_ref[...], preferred_element_type=jnp.float32)
    y = jnp.maximum(y + b_ref[...], 0.0)          # bias + ReLU in f32 (VPU)
    o_ref[...] = y.astype(o_ref.dtype)


def input_linear_relu(x_pad, w, b, *, tm):
    n_pad, f = x_pad.shape
    h = w.shape[1]
    return pl.pallas_call(
        _in_linear_kernel,
        out_shape=jax.ShapeDtypeStruct((n_pad, h), jnp.bfloat16),
        grid_spec=pltpu.PrefetchScalarGridSpec(
            num_scalar_prefetch=0,
            grid=(n_pad // tm,),
            in_specs=[
                pl.BlockSpec((tm, f), lambda i: (i, 0)),
                pl.BlockSpec((f, h), lambda i: (0, 0),
                             pipeline_mode=pl.Buffered(1)),
                pl.BlockSpec((1, h), lambda i: (0, 0),
                             pipeline_mode=pl.Buffered(1)),
            ],
            out_specs=pl.BlockSpec((tm, h), lambda i: (i, 0)),
        ),
        compiler_params=pltpu.CompilerParams(
            dimension_semantics=("parallel",)),
    )(x_pad, w, b)


# ---------------------------------------------------------------------------
# Fused EGNN stack: L x (A_hat@x propagation + residual + W + SReLU) + out proj
# ---------------------------------------------------------------------------
def _egnn_fused_kernel(adj_ref, x0_ref, w_ref, sb_ref, wo_ref, bo_ref,
                       o_ref, x_buf, acc,
                       *, beta, residual_weight, tm, tk, adj_resident):
    l = pl.program_id(0)          # layer               (sequential dependence)
    i = pl.program_id(1)          # node row tile
    k = pl.program_id(2)          # contraction tile over source nodes
    nl = pl.num_programs(0)
    nk = pl.num_programs(2)

    cur = l % 2                   # ping-pong slab holding layer l's features
    nxt = 1 - cur

    # Layer-0 seed: copy x0 into slab 0 of the ping-pong buffer slab-by-slab
    # during the first row tile's k loop, so the copy overlaps with MXU work
    # instead of serializing pipeline ramp-up.
    @pl.when((l == 0) & (i == 0))
    def _seed():
        s = pl.multiple_of(k * tk, tk)
        x_buf[0, pl.ds(s, tk), :] = x0_ref[pl.ds(s, tk), :]

    @pl.when(k == 0)
    def _zero():
        acc[...] = jnp.zeros_like(acc)

    # Propagation: acc += A_hat[i-tile, k-slab] @ x[k-slab]  (bf16 MXU, f32 acc)
    if adj_resident:
        # full A_hat resident in VMEM; slice rows only (lane dim stays dense)
        a_tile = adj_ref[pl.ds(pl.multiple_of(i * tm, tm), tm), :]
    else:
        a_tile = adj_ref[...]
    x_slab = x_buf[cur, pl.ds(pl.multiple_of(k * tk, tk), tk), :]
    acc[...] += jnp.dot(a_tile, x_slab, preferred_element_type=jnp.float32)

    @pl.when(k == nk - 1)
    def _finish():
        r = pl.multiple_of(i * tm, tm)
        x_row = x_buf[cur, pl.ds(r, tm), :].astype(jnp.float32)
        x0_row = x0_ref[pl.ds(r, tm), :].astype(jnp.float32)
        # residual + initial connection (f32 VPU math)
        comb = ((1.0 - residual_weight - beta) * acc[...]
                + residual_weight * x_row
                + beta * x0_row)
        # feature transform (bf16 MXU, f32 acc)
        y = jnp.dot(comb.astype(jnp.bfloat16), w_ref[...],
                    preferred_element_type=jnp.float32)
        sb = sb_ref[...]                              # (1, H) f32
        h_new = jnp.maximum(y - sb, 0.0) + sb         # SReLU, f32
        h_bf = h_new.astype(jnp.bfloat16)
        # stash next-layer features in the other ping-pong slab
        x_buf[nxt, pl.ds(r, tm), :] = h_bf

        # Output projection only on the LAST layer (layer axis is outermost,
        # so these writebacks land last in HBM).
        @pl.when(l == nl - 1)
        def _project():
            o_ref[...] = (jnp.dot(h_bf, wo_ref[...],
                                  preferred_element_type=jnp.float32)
                          + bo_ref[...]).astype(o_ref.dtype)


def egnn_fused(adj, x0, gcn_w, srelu_b, out_w, out_b,
               *, beta, residual_weight, tile, adj_mode="auto"):
    n_pad = adj.shape[0]
    num_layers, hdim, _ = gcn_w.shape
    cpad = out_w.shape[1]
    tm = tile

    vmem_budget = _vmem_budget_bytes()

    # Static VMEM residents (independent of the adjacency policy).
    resident_bytes = (2 * n_pad * hdim * 2                 # ping-pong features
                      + n_pad * hdim * 2                   # x0 (single buffer)
                      + 2 * (hdim * hdim * 2 + hdim * 4)   # W_l + SReLU bias (x2)
                      + hdim * cpad * 2 + cpad * 4         # out proj (single)
                      + 2 * tm * cpad * 4                  # output tiles (x2)
                      + tm * hdim * 4)                     # accumulator

    if adj_mode == "resident":
        adj_resident = True
    elif adj_mode == "stream":
        adj_resident = False
    else:  # auto
        adj_resident = (resident_bytes + n_pad * n_pad * 2
                        <= int(0.85 * vmem_budget))

    if adj_resident:
        tk = n_pad
        adj_spec = pl.BlockSpec((n_pad, n_pad), lambda l, i, k: (0, 0),
                                pipeline_mode=pl.Buffered(1))
        adj_vmem = n_pad * n_pad * 2
        adj_hbm = n_pad * n_pad * 2                       # read once, reused L x
    else:
        tk = tile
        adj_spec = pl.BlockSpec((tm, tk), lambda l, i, k: (i, k))
        adj_vmem = 2 * tm * tk * 2
        adj_hbm = num_layers * n_pad * n_pad * 2          # re-streamed per layer

    need = resident_bytes + adj_vmem
    vmem_limit = int(min(vmem_budget, max(24 * 2**20, int(need * 1.25))))

    grid = (num_layers, n_pad // tm, n_pad // tk)

    flops = (num_layers * (2 * n_pad * n_pad * hdim + 2 * n_pad * hdim * hdim)
             + 2 * n_pad * hdim * cpad)
    bytes_accessed = (adj_hbm
                      + n_pad * hdim * 2
                      + num_layers * (hdim * hdim * 2 + hdim * 4)
                      + hdim * cpad * 2 + cpad * 4
                      + n_pad * cpad * 4)

    kernel = functools.partial(_egnn_fused_kernel,
                               beta=float(beta),
                               residual_weight=float(residual_weight),
                               tm=tm, tk=tk, adj_resident=adj_resident)

    return pl.pallas_call(
        kernel,
        out_shape=jax.ShapeDtypeStruct((n_pad, cpad), jnp.float32),
        grid_spec=pltpu.PrefetchScalarGridSpec(
            num_scalar_prefetch=0,
            grid=grid,
            in_specs=[
                adj_spec,                                               # A_hat
                pl.BlockSpec((n_pad, hdim), lambda l, i, k: (0, 0),
                             pipeline_mode=pl.Buffered(1)),             # x0
                pl.BlockSpec((None, hdim, hdim),
                             lambda l, i, k: (l, 0, 0)),                # W_l
                pl.BlockSpec((None, 1, hdim),
                             lambda l, i, k: (l, 0, 0)),                # srelu_b
                pl.BlockSpec((hdim, cpad), lambda l, i, k: (0, 0),
                             pipeline_mode=pl.Buffered(1)),             # W_out
                pl.BlockSpec((1, cpad), lambda l, i, k: (0, 0),
                             pipeline_mode=pl.Buffered(1)),             # b_out
            ],
            out_specs=pl.BlockSpec((tm, cpad), lambda l, i, k: (i, 0)),
            scratch_shapes=[
                pltpu.VMEM((2, n_pad, hdim), jnp.bfloat16),   # ping-pong feats
                pltpu.VMEM((tm, hdim), jnp.float32),          # propagation acc
            ],
        ),
        compiler_params=pltpu.CompilerParams(
            # Layer and K axes are true sequential dependencies.  The row axis
            # also stays "arbitrary" because the ping-pong feature scratch is
            # shared across layers (a core-parallel split would leave each core
            # with only half of the previous layer's rows).
            dimension_semantics=("arbitrary", "arbitrary", "arbitrary"),
            vmem_limit_bytes=vmem_limit,
        ),
        cost_estimate=pl.CostEstimate(flops=flops, transcendentals=0,
                                      bytes_accessed=bytes_accessed),
    )(adj, x0, gcn_w, srelu_b, out_w, out_b)


# ---------------------------------------------------------------------------
# Glue: graph normalization + parameter init + full forward + JAX reference
# ---------------------------------------------------------------------------
def gcn_norm_dense(edge_index, num_nodes):
    """Dense D^{-1/2}(A + I)D^{-1/2} from an int (2, E) edge_index (f32)."""
    a = jnp.zeros((num_nodes, num_nodes), jnp.float32)
    a = a.at[edge_index[0], edge_index[1]].set(1.0)
    idx = jnp.arange(num_nodes)
    a = a.at[idx, idx].set(1.0)                 # add self loops
    deg = a.sum(axis=1)
    dinv = jax.lax.rsqrt(jnp.maximum(deg, 1e-12))
    return dinv[:, None] * a * dinv[None, :]


def init_egnn_params(key, num_feats, dim_hidden, num_classes, num_layers,
                     bias_srelu):
    ks = jax.random.split(key, num_layers + 2)
    return {
        # Linear layers stored pre-transposed as (in, out); y = x @ W + b.
        "in_w": jax.random.normal(ks[0], (num_feats, dim_hidden), jnp.float32)
                * (1.0 / jnp.sqrt(num_feats)),
        "in_b": jnp.zeros((dim_hidden,), jnp.float32),
        "out_w": jax.random.normal(ks[1], (dim_hidden, num_classes), jnp.float32)
                 * (1.0 / jnp.sqrt(dim_hidden)),
        "out_b": jnp.zeros((num_classes,), jnp.float32),
        # EGNNConv weights, (dim_hidden, dim_hidden), bias=False.
        "gcn_w": [jax.random.normal(ks[2 + i], (dim_hidden, dim_hidden),
                                    jnp.float32) * (1.0 / jnp.sqrt(dim_hidden))
                  for i in range(num_layers)],
        # SReLU biases, constant-initialized to bias_SReLU.
        "srelu_b": [jnp.full((dim_hidden,), bias_srelu, jnp.float32)
                    for _ in range(num_layers)],
    }


def egnn_reference(params, x, adj, *, num_layers, beta, c_min):
    """Pure-JAX f32 reference of the same eval-mode forward pass."""
    rw = c_min - beta
    h = jax.nn.relu(x @ params["in_w"] + params["in_b"])
    h0 = h
    for i in range(num_layers):
        prop = adj @ h
        comb = (1.0 - rw - beta) * prop + rw * h + beta * h0
        y = comb @ params["gcn_w"][i]
        b = params["srelu_b"][i]
        h = jnp.maximum(y - b, 0.0) + b
    return h @ params["out_w"] + params["out_b"]


def egnn_forward(params, x, adj, *, num_layers, beta, c_min, num_classes,
                 adj_mode="auto", tile=None):
    n, f = x.shape
    hdim = params["in_w"].shape[1]
    residual_weight = c_min - beta
    # NOTE: c_max only constrains EGNNConv weights during training (spectral
    # clipping); it has no effect on this eval-mode forward pass.

    # Tile selection: big graphs use 512-wide streamed tiles (closer to the
    # HBM roofline), medium ones 256, tiny ones a single 128 tile.
    if tile is None:
        if n >= 2048:
            tile = 512
        elif n >= 256:
            tile = 256
        else:
            tile = 128
    n_pad = _round_up(n, tile)
    cpad = _round_up(max(num_classes, 128), 128)   # lane-dense output slab

    x_pad = jnp.zeros((n_pad, f), jnp.float32).at[:n].set(x).astype(jnp.bfloat16)
    adj_pad = jnp.pad(adj, ((0, n_pad - n), (0, n_pad - n))).astype(jnp.bfloat16)

    in_w = params["in_w"].astype(jnp.bfloat16)
    in_b = params["in_b"].reshape(1, hdim).astype(jnp.float32)
    gcn_w = jnp.stack(params["gcn_w"]).astype(jnp.bfloat16)               # (L,H,H)
    srelu_b = (jnp.stack(params["srelu_b"])
               .reshape(num_layers, 1, hdim).astype(jnp.float32))         # (L,1,H)
    out_w = (jnp.zeros((hdim, cpad), jnp.float32)
             .at[:, :num_classes].set(params["out_w"]).astype(jnp.bfloat16))
    out_b = jnp.zeros((1, cpad), jnp.float32).at[0, :num_classes].set(params["out_b"])

    # input_layer + ReLU (dropout is identity in eval mode)
    x0 = input_linear_relu(x_pad, in_w, in_b, tm=tile)          # (n_pad, H) bf16
    # fused: L x (EGNNConv + SReLU) + output_layer, padded/lane-dense
    out_pad = egnn_fused(adj_pad, x0, gcn_w, srelu_b, out_w, out_b,
                         beta=beta, residual_weight=residual_weight,
                         tile=tile, adj_mode=adj_mode)
    return out_pad[:n, :num_classes]


# ---------------------------------------------------------------------------
if __name__ == "__main__":
    # "args" (dataset = 'cora'-like, i.e. the non-ogbn-arxiv path)
    num_feats = 64
    dim_hidden = 128
    num_classes = 8
    num_layers = 4
    c_min, c_max, beta, bias_srelu = 0.2, 1.0, 0.1, -10.0

    key = jax.random.PRNGKey(0)
    kg1, kg2, kp = jax.random.split(key, 3)

    def make_graph(k, n, e):
        kf, ke = jax.random.split(k)
        feats = jax.random.normal(kf, (n, num_feats), jnp.float32)
        eh = jax.random.randint(ke, (2, e), 0, n)
        edge_index = jnp.concatenate([eh, eh[::-1]], axis=1)    # symmetric
        return feats, gcn_norm_dense(edge_index, n)

    params = init_egnn_params(kp, num_feats, dim_hidden, num_classes,
                              num_layers, bias_srelu)

    # 1) Small graph -> VMEM-resident adjacency path.
    x1, a1 = make_graph(kg1, 128, 256)
    out1 = egnn_forward(params, x1, a1, num_layers=num_layers, beta=beta,
                        c_min=c_min, num_classes=num_classes)
    out1 = jax.block_until_ready(out1)
    ref1 = jax.block_until_ready(
        egnn_reference(params, x1, a1, num_layers=num_layers, beta=beta,
                       c_min=c_min))
    assert out1.shape == (128, num_classes)
    assert bool(jnp.all(jnp.isfinite(out1)))
    err1 = float(jnp.max(jnp.abs(out1 - ref1)))
    assert err1 < 0.35, f"resident-path mismatch vs f32 reference: {err1}"

    # 2) Ragged graph, forced streamed adjacency -> exercises the k-tiled
    #    accumulation, per-slab seeding and row padding.
    x2, a2 = make_graph(kg2, 192, 512)
    out2 = egnn_forward(params, x2, a2, num_layers=num_layers, beta=beta,
                        c_min=c_min, num_classes=num_classes,
                        adj_mode="stream", tile=128)
    out2 = jax.block_until_ready(out2)
    ref2 = jax.block_until_ready(
        egnn_reference(params, x2, a2, num_layers=num_layers, beta=beta,
                       c_min=c_min))
    assert out2.shape == (192, num_classes)
    assert bool(jnp.all(jnp.isfinite(out2)))
    err2 = float(jnp.max(jnp.abs(out2 - ref2)))
    assert err2 < 0.35, f"streamed-path mismatch vs f32 reference: {err2}"

    print("KERNEL_OK")
</pallas_src>

<mosaic_0001>
module attributes {stable_mosaic.version = 11 : i64} {
  func.func @_in_linear_kernel(%arg0: i32, %arg1: memref<128x64xbf16, #tpu.memory_space<vmem>>, %arg2: memref<64x128xbf16, #tpu.memory_space<vmem>>, %arg3: memref<1x128xf32, #tpu.memory_space<vmem>>, %arg4: memref<128x128xbf16, #tpu.memory_space<vmem>>) attributes {dimension_semantics = [#tpu.dimension_semantics<parallel>], iteration_bounds = array<i64: 1>, scalar_prefetch = 0 : i64, scratch_operands = 0 : i64, tpu.core_type = #tpu.core_type<tc>, window_params = [{transform_indices = @transform_0, window_bounds = array<i64: 128, 64>}, {pipeline_mode = #tpu.pipeline_mode<synchronous>, transform_indices = @transform_1, window_bounds = array<i64: 64, 128>}, {pipeline_mode = #tpu.pipeline_mode<synchronous>, transform_indices = @transform_2, window_bounds = array<i64: 1, 128>}, {transform_indices = @transform_3, window_bounds = array<i64: 128, 128>}]} {
    %c0 = arith.constant 0 : index
    %c0_0 = arith.constant 0 : index
    %0 = vector.load %arg1[%c0, %c0_0] : memref<128x64xbf16, #tpu.memory_space<vmem>>, vector<128x64xbf16>
    %c0_1 = arith.constant 0 : index
    %c0_2 = arith.constant 0 : index
    %1 = vector.load %arg2[%c0_1, %c0_2] : memref<64x128xbf16, #tpu.memory_space<vmem>>, vector<64x128xbf16>
    %cst = arith.constant dense<0.000000e+00> : vector<128x128xf32>
    %2 = tpu.matmul %0, %1, %cst {dimension_numbers = #tpu.dot_dimension_numbers<[1], [0], [0], [1], [0, 0, 1, 1], [], []>} : vector<128x64xbf16>, vector<64x128xbf16>, vector<128x128xf32> -> vector<128x128xf32>
    %c0_3 = arith.constant 0 : index
    %c0_4 = arith.constant 0 : index
    %3 = vector.load %arg3[%c0_3, %c0_4] : memref<1x128xf32, #tpu.memory_space<vmem>>, vector<1x128xf32>
    %4 = vector.broadcast %3 : vector<1x128xf32> to vector<128x128xf32>
    %5 = arith.addf %2, %4 : vector<128x128xf32>
    %cst_5 = arith.constant 0.000000e+00 : f32
    %6 = vector.broadcast %cst_5 : f32 to vector<128x128xf32>
    %7 = arith.maximumf %5, %6 : vector<128x128xf32>
    %8 = arith.truncf %7 : vector<128x128xf32> to vector<128x128xbf16>
    %c0_6 = arith.constant 0 : index
    %c0_7 = arith.constant 0 : index
    %9 = vector.load %arg4[%c0_6, %c0_7] : memref<128x128xbf16, #tpu.memory_space<vmem>>, vector<128x128xbf16>
    tpu.vector_store %arg4[%c0_6, %c0_7], %8 {strides = array<i32>} : memref<128x128xbf16, #tpu.memory_space<vmem>>, vector<128x128xbf16>,
    return
  }
  func.func @transform_0(%arg0: i32) -> (i32, i32) {
    %c0_i32 = arith.constant 0 : i32
    %c0_i32_0 = arith.constant 0 : i32
    return %arg0, %c0_i32 : i32, i32
  }
  func.func @transform_1(%arg0: i32) -> (i32, i32) {
    %c0_i32 = arith.constant 0 : i32
    %c0_i32_0 = arith.constant 0 : i32
    %c0_i32_1 = arith.constant 0 : i32
    return %c0_i32, %c0_i32_0 : i32, i32
  }
  func.func @transform_2(%arg0: i32) -> (i32, i32) {
    %c0_i32 = arith.constant 0 : i32
    %c0_i32_0 = arith.constant 0 : i32
    %c0_i32_1 = arith.constant 0 : i32
    return %c0_i32, %c0_i32_0 : i32, i32
  }
  func.func @transform_3(%arg0: i32) -> (i32, i32) {
    %c0_i32 = arith.constant 0 : i32
    %c0_i32_0 = arith.constant 0 : i32
    return %arg0, %c0_i32 : i32, i32
  }
}

</mosaic_0001>

<llo_original>
// kernel: tpu_custom_call.1
$region0: #{tpu_custom_call.1}
  #allocation0 [shape = 'u32[]', space=smem, size = 0x4, offset = 0x4, fixed_abs, tag = 'smem constant byte address 0x4 - core index']
  #allocation1 [shape = 'u32[72,128]{1,0:T(1,128)}', space=vmem, size = 0x9000, scoped, tag = 'internal scratch']
  %s0 = inlined_call_operand.vmem [shape: bf16[128,64], index: 0, kind: input, shape index: {}]
  %s1 = inlined_call_operand.vmem [shape: bf16[64,128], index: 1, kind: input, shape index: {}]
  %s2 = inlined_call_operand.vmem [shape: f32[1,128], index: 2, kind: input, shape index: {}]
  %s3 = inlined_call_operand.hbm [shape: bf16[128,128], index: 3, kind: output, shape index: {}]
  %s4 = sld [smem:[#allocation0]]
  $region22: #{tpu_custom_call.1} parent=0
    _
  %s6 = ssub.s32 1, %s4
  %s7 = scalar_select 0, %s6, %s4
  $region1: #{tpu_custom_call.1} parent=0
    #allocation2 [shape = 'u8[32768]{0}', space=vmem, size = 0x8000, scoped, tag = 'output window, operand 0, single buffered']
    #allocation3 [shape = 's32[1]{0}', space=sflag, size = 0x4, scoped, tag = 'scoped memory for tpu_custom_call.1']
    %8 = vsyncpa [#allocation3], 0
    // Predicated region
    $region2: #{tpu_custom_call.1} parent=1 // pred_check
      _
    $region3: #{tpu_custom_call.1} parent=1 // pred_check_branch
      %10 = sbr.rel (0) target = $region5
    $region4: #{tpu_custom_call.1} parent=1 // pred_region
      _
    $region5: #{tpu_custom_call.1} parent=1 // pred_fallthru
      _
    // Predicated region
    $region6: #{tpu_custom_call.1} parent=1 // pred_check
      _
    $region7: #{tpu_custom_call.1} parent=1 // pred_check_branch
      %12 = sbr.rel (0) target = $region9
    $region8: #{tpu_custom_call.1} parent=1 // pred_region
      _
    $region9: #{tpu_custom_call.1} parent=1 // pred_fallthru
      _
    // Predicated region
    $region10: #{tpu_custom_call.1} parent=1 // pred_check
      _
    $region11: #{tpu_custom_call.1} parent=1 // pred_check_branch
      %14 = sbr.rel (0) target = $region13
    $region12: #{tpu_custom_call.1} parent=1 // pred_region
      _
    $region13: #{tpu_custom_call.1} parent=1 // pred_fallthru
      _
    %v16 = vld [vmem:[%s0] sm:$0xf]
    %v17 = vld [vmem:[%s0 + $0x4] sm:$0xf]
    %v18 = vld [vmem:[%s0 + $0x8] sm:$0xf]
    %v19 = vld [vmem:[%s0 + $0xc] sm:$0xf]
    %v20 = vld [vmem:[%s0 + $0x10] sm:$0xf]
    %v21 = vld [vmem:[%s0 + $0x14] sm:$0xf]
    %v22 = vld [vmem:[%s0 + $0x18] sm:$0xf]
    %v23 = vld [vmem:[%s0 + $0x1c] sm:$0xf]
    %v24 = vld [vmem:[%s0 + $0x20] sm:$0xf]
    %v25 = vld [vmem:[%s0 + $0x24] sm:$0xf]
    %v26 = vld [vmem:[%s0 + $0x28] sm:$0xf]
    %v27 = vld [vmem:[%s0 + $0x2c] sm:$0xf]
    %v28 = vld [vmem:[%s0 + $0x30] sm:$0xf]
    %v29 = vld [vmem:[%s0 + $0x34] sm:$0xf]
    %v30 = vld [vmem:[%s0 + $0x38] sm:$0xf]
    %v31 = vld [vmem:[%s0 + $0x3c] sm:$0xf]
    %v32 = vld [vmem:[%s1] sm:$0xf]
    %v33 = vld [vmem:[%s1 + $0x4] sm:$0xf]
    %v34 = vld [vmem:[%s1 + $0x8] sm:$0xf]
    %v35 = vld [vmem:[%s1 + $0xc] sm:$0xf]
    %v36 = vld [vmem:[%s1 + $0x10] sm:$0xf]
    %v37 = vld [vmem:[%s1 + $0x14] sm:$0xf]
    %v38 = vld [vmem:[%s1 + $0x18] sm:$0xf]
    %v39 = vld [vmem:[%s1 + $0x1c] sm:$0xf]
    %v40 = vld [vmem:[%s2] sm:$0x1]
    %v42 = vperm.slane %v40, 0
    %v60 = vunpack.c.l.b16 %v16
    %v61 = vunpack.c.l.b16 %v17
    %v62 = vunpack.c.l.b16 %v18
    %v63 = vunpack.c.l.b16 %v19
    %v64 = vunpack.c.l.b16 %v20
    %v65 = vunpack.c.l.b16 %v21
    %v66 = vunpack.c.l.b16 %v22
    %v67 = vunpack.c.l.b16 %v23
    %v68 = vunpack.c.l.b16 %v24
    %v69 = vunpack.c.l.b16 %v25
    %v70 = vunpack.c.l.b16 %v26
    %v71 = vunpack.c.l.b16 %v27
    %v72 = vunpack.c.l.b16 %v28
    %v73 = vunpack.c.l.b16 %v29
    %v74 = vunpack.c.l.b16 %v30
    %v75 = vunpack.c.l.b16 %v31
    %v76 = vpack.c.b16 %v61, %v60
    %v77 = vpack.c.b16 %v63, %v62
    %v78 = vpack.c.b16 %v65, %v64
    %v79 = vpack.c.b16 %v67, %v66
    %v80 = vpack.c.b16 %v69, %v68
    %v81 = vpack.c.b16 %v71, %v70
    %v82 = vpack.c.b16 %v73, %v72
    %v83 = vpack.c.b16 %v75, %v74
    %v92 = vunpack.c.l.b16 %v32
    %v93 = vunpack.c.l.b16 %v33
    %v94 = vunpack.c.l.b16 %v34
    %v95 = vunpack.c.l.b16 %v35
    %v96 = vunpack.c.l.b16 %v36
    %v97 = vunpack.c.l.b16 %v37
    %v98 = vunpack.c.l.b16 %v38
    %v99 = vunpack.c.l.b16 %v39
    %v100 = vpack.c.b16 %v93, %v92
    %v101 = vpack.c.b16 %v95, %v94
    %v102 = vpack.c.b16 %v97, %v96
    %v103 = vpack.c.b16 %v99, %v98
    %vm108 = vcmask 523264
    %v110 = vsel %vm108, %v76, 0
    %v113 = vsel %vm108, %v77, 0
    %v116 = vsel %vm108, %v78, 0
    %v119 = vsel %vm108, %v79, 0
    %v122 = vsel %vm108, %v80, 0
    %v125 = vsel %vm108, %v81, 0
    %v128 = vsel %vm108, %v82, 0
    %v131 = vsel %vm108, %v83, 0
    %133 = vmatpush.bf16.msra.mxu0 0
    %134 = vmatpush.bf16.msra.mxu0 0
    %135 = vmatpush.bf16.msra.mxu0 0
    %136 = vmatpush.bf16.msra.mxu0 0
    %137 = vmatpush.bf16.msra.mxu0 %v103
    %138 = vmatpush.bf16.msra.mxu0 %v102
    %139 = vmatpush.bf16.msra.mxu0 %v101
    %140 = vmatpush.bf16.msra.mxu0 %v100
    %141 = vmatmul.bf16.gmra.mxu0 %v110
    %v142 = vpop.f32.mrf.mxu0
    %v143 = vadd.f32 %v42, %v142
    %v144 = vpop.f32.mrf.mxu0
    %v145 = vadd.f32 %v42, %v144
    %146 = vmatmul.bf16.gmra.mxu0 %v113
    %v147 = vpop.f32.mrf.mxu0
    %v148 = vadd.f32 %v42, %v147
    %v149 = vpop.f32.mrf.mxu0
    %v150 = vadd.f32 %v42, %v149
    %151 = vmatmul.bf16.gmra.mxu0 %v116
    %v152 = vpop.f32.mrf.mxu0
    %v153 = vadd.f32 %v42, %v152
    %v154 = vpop.f32.mrf.mxu0
    %v155 = vadd.f32 %v42, %v154
    %156 = vmatmul.bf16.gmra.mxu0 %v119
    %v157 = vpop.f32.mrf.mxu0
    %v158 = vadd.f32 %v42, %v157
    %v159 = vpop.f32.mrf.mxu0
    %v160 = vadd.f32 %v42, %v159
    %161 = vmatmul.bf16.gmra.mxu0 %v122
    %v162 = vpop.f32.mrf.mxu0
    %v163 = vadd.f32 %v42, %v162
    %v164 = vpop.f32.mrf.mxu0
    %v165 = vadd.f32 %v42, %v164
    %166 = vmatmul.bf16.gmra.mxu0 %v125
    %v167 = vpop.f32.mrf.mxu0
    %v168 = vadd.f32 %v42, %v167
    %v169 = vpop.f32.mrf.mxu0
    %v170 = vadd.f32 %v42, %v169
    %171 = vmatmul.bf16.gmra.mxu0 %v128
    %v172 = vpop.f32.mrf.mxu0
    %v173 = vadd.f32 %v42, %v172
    %v174 = vpop.f32.mrf.mxu0
    %v175 = vadd.f32 %v42, %v174
    %176 = vmatmul.bf16.gmra.mxu0 %v131
    %v177 = vpop.f32.mrf.mxu0
    %v178 = vadd.f32 %v42, %v177
    %v179 = vpop.f32.mrf.mxu0
    %v180 = vadd.f32 %v42, %v179
    %181 = vdwg.mxu0
    %v182 = vmax.f32 %v143, 0.0
    %v183 = vmax.f32 %v145, 0.0
    %v184 = vmax.f32 %v148, 0.0
    %v185 = vmax.f32 %v150, 0.0
    %v186 = vmax.f32 %v153, 0.0
    %v187 = vmax.f32 %v155, 0.0
    %v188 = vmax.f32 %v158, 0.0
    %v189 = vmax.f32 %v160, 0.0
    %v190 = vmax.f32 %v163, 0.0
    %v191 = vmax.f32 %v165, 0.0
    %v192 = vmax.f32 %v168, 0.0
    %v193 = vmax.f32 %v170, 0.0
    %v194 = vmax.f32 %v173, 0.0
    %v195 = vmax.f32 %v175, 0.0
    %v196 = vmax.f32 %v178, 0.0
    %v197 = vmax.f32 %v180, 0.0
    %v198 = vpack.c.bf16 %v182, %v182
    %v199 = vpack.c.bf16 %v183, %v183
    %v200 = vpack.c.bf16 %v184, %v184
    %v201 = vpack.c.bf16 %v185, %v185
    %v202 = vpack.c.bf16 %v186, %v186
    %v203 = vpack.c.bf16 %v187, %v187
    %v204 = vpack.c.bf16 %v188, %v188
    %v205 = vpack.c.bf16 %v189, %v189
    %v206 = vpack.c.bf16 %v190, %v190
    %v207 = vpack.c.bf16 %v191, %v191
    %v208 = vpack.c.bf16 %v192, %v192
    %v209 = vpack.c.bf16 %v193, %v193
    %v210 = vpack.c.bf16 %v194, %v194
    %v211 = vpack.c.bf16 %v195, %v195
    %v212 = vpack.c.bf16 %v196, %v196
    %v213 = vpack.c.bf16 %v197, %v197
    %214 = vst [vmem:[#allocation2] sm:$0xf] %v198
    %215 = vst [vmem:[#allocation2 + $0x4] sm:$0xf] %v199
    %216 = vst [vmem:[#allocation2 + $0x8] sm:$0xf] %v200
    %217 = vst [vmem:[#allocation2 + $0xc] sm:$0xf] %v201
    %218 = vst [vmem:[#allocation2 + $0x10] sm:$0xf] %v202
    %219 = vst [vmem:[#allocation2 + $0x14] sm:$0xf] %v203
    %220 = vst [vmem:[#allocation2 + $0x18] sm:$0xf] %v204
    %221 = vst [vmem:[#allocation2 + $0x1c] sm:$0xf] %v205
    %222 = vst [vmem:[#allocation2 + $0x20] sm:$0xf] %v206
    %223 = vst [vmem:[#allocation2 + $0x24] sm:$0xf] %v207
    %224 = vst [vmem:[#allocation2 + $0x28] sm:$0xf] %v208
    %225 = vst [vmem:[#allocation2 + $0x2c] sm:$0xf] %v209
    %226 = vst [vmem:[#allocation2 + $0x30] sm:$0xf] %v210
    %227 = vst [vmem:[#allocation2 + $0x34] sm:$0xf] %v211
    %228 = vst [vmem:[#allocation2 + $0x38] sm:$0xf] %v212
    %229 = vst [vmem:[#allocation2 + $0x3c] sm:$0xf] %v213
    // Predicated region
    $region14: #{tpu_custom_call.1} parent=1 // pred_check
      _
    $region15: #{tpu_custom_call.1} parent=1 // pred_check_branch
      %231 = sbr.rel (0) target = $region17
    $region16: #{tpu_custom_call.1} parent=1 // pred_region
      %233 = vsyncadd [#allocation3], 0
      %s234 = sshll.u32 [#allocation2], 4
      %s235 = int_to_ptr.vmem [resolvable:$true] %s234
      %s236 = sshll.u32 %s3, 4
      %s237 = int_to_ptr.hbm [resolvable:$true] %s236
      %242 = dma.vmem_to_hbm [thread:$0]  %s235, 1024, %s237, [#allocation3], 64, 64, 4
    $region17: #{tpu_custom_call.1} parent=1 // pred_fallthru
      _
    // Predicated region
    $region18: #{tpu_custom_call.1} parent=1 // pred_check
      _
    $region19: #{tpu_custom_call.1} parent=1 // pred_check_branch
      %244 = sbr.rel (0) target = $region21
    $region20: #{tpu_custom_call.1} parent=1 // pred_region
      %246 = dma.done [#allocation3], 1024
    $region21: #{tpu_custom_call.1} parent=1 // pred_fallthru
      _
    %247 = vsyncpa [#allocation3], 1

</llo_original>
